<compile_context>
chip_gen: v7x
topology: tpu7x:2x2x1
jax: 0.10.0
libtpu: 0.0.40
codegen_flags: <defaults>
</compile_context>

<pallas_src>
import jax
import jax.numpy as jnp
from jax.experimental import pallas as pl
from jax.experimental.pallas import tpu as pltpu


# --------------------------------------------------------------------------- #
# Kernel                                                                      #
# --------------------------------------------------------------------------- #
def make_mlp_kernel(relu_flags, compute_dtype):
    """Fused MLP kernel: chain of (h @ W + b), optional ReLU per layer."""
    n_layers = len(relu_flags)

    def kernel(x_ref, *refs):
        # refs = (w0, b0, w1, b1, ..., out_ref)
        out_ref = refs[-1]
        param_refs = refs[:-1]
        h = x_ref[...]                               # bf16 tile [tile, d_in]
        for i in range(n_layers):
            w = param_refs[2 * i][...]               # bf16 [in_i, out_i]
            b = param_refs[2 * i + 1][...]           # f32  [1, out_i]
            h = jnp.dot(h.astype(compute_dtype), w,
                        preferred_element_type=jnp.float32) + b
            if relu_flags[i]:
                h = jnp.maximum(h, 0.0)
        out_ref[...] = h.astype(out_ref.dtype)       # lane-dense (128-multiple)

    return kernel


# --------------------------------------------------------------------------- #
# Parameter preparation (fusion + lane padding)                               #
# --------------------------------------------------------------------------- #
def fuse_linear_chain(params, relu_flags):
    """Fold adjacent Linear layers that have no nonlinearity between them."""
    fused_p, fused_r = [], []
    i = 0
    while i < len(params):
        w, b = params[i]
        relu = relu_flags[i]
        while (not relu) and (i + 1 < len(params)):
            w2, b2 = params[i + 1]
            w = w @ w2                 # exact linear algebra (f32)
            b = b @ w2 + b2
            relu = relu_flags[i + 1]
            i += 1
        fused_p.append((w, b))
        fused_r.append(relu)
        i += 1
    return fused_p, fused_r


def prepare_params(params, relu_flags, *, fuse_linear=True, lane_multiple=128):
    """Fuse ReLU-free adjacent layers and pad final output dim to 128 lanes."""
    params = list(params)
    relu_flags = list(relu_flags)
    if fuse_linear:
        params, relu_flags = fuse_linear_chain(params, relu_flags)
    pad = (-params[-1][0].shape[1]) % lane_multiple
    if pad:
        w_l, b_l = params[-1]
        params[-1] = (jnp.pad(w_l, ((0, 0), (0, pad))),
                      jnp.pad(b_l, ((0, 0), (0, pad))))
    return params, relu_flags


# --------------------------------------------------------------------------- #
# Wrapper                                                                     #
# --------------------------------------------------------------------------- #
def encoder_net_forward(x, params, relu_flags, *, batch_tile=None,
                        compute_dtype=jnp.bfloat16, fuse_linear=True):
    """Run fused encoder+decoder MLP via one pallas_call.

    x:      [B, D_in] float32
    params: list of (W [in, out], b [1, out]) for all layers (encoder then
            decoder), f32.
    """
    B, d_in = x.shape
    orig_d_out = params[-1][0].shape[1]

    params, relu_flags = prepare_params(params, relu_flags,
                                        fuse_linear=fuse_linear)
    d_out = params[-1][0].shape[1]   # padded to multiple of 128

    # Batch tile: one grid step for small B, big tiles for large B.
    if batch_tile is None:
        batch_tile = B if B <= 2048 else 2048
    batch_tile = min(batch_tile, B)
    sub = 8 * (4 // jnp.dtype(compute_dtype).itemsize)   # 16 for bf16, 8 for f32
    batch_tile = -(-batch_tile // sub) * sub
    B_pad = -(-B // batch_tile) * batch_tile
    if B_pad != B:
        x = jnp.pad(x, ((0, B_pad - B), (0, 0)))

    # bf16 operands, f32 accumulation / biases.
    x = x.astype(compute_dtype)
    flat_params = []
    for w, b in params:
        flat_params += [w.astype(compute_dtype), b.astype(jnp.float32)]

    # x tiled over batch; weights/biases whole-array VMEM residents (tiny).
    in_specs = [pl.BlockSpec((batch_tile, d_in), lambda i: (i, 0))]
    for _ in params:
        in_specs.append(pl.BlockSpec(memory_space=pltpu.MemorySpace.VMEM))
        in_specs.append(pl.BlockSpec(memory_space=pltpu.MemorySpace.VMEM))
    out_spec = pl.BlockSpec((batch_tile, d_out), lambda i: (i, 0))

    out = pl.pallas_call(
        make_mlp_kernel(relu_flags, compute_dtype),
        out_shape=jax.ShapeDtypeStruct((B_pad, d_out), jnp.float32),
        grid_spec=pltpu.PrefetchScalarGridSpec(
            num_scalar_prefetch=0,
            grid=(B_pad // batch_tile,),
            in_specs=in_specs,
            out_specs=out_spec,
        ),
        compiler_params=pltpu.CompilerParams(
            dimension_semantics=("parallel",)),
    )(x, *flat_params)

    return out[:B, :orig_d_out]


# --------------------------------------------------------------------------- #
# References                                                                  #
# --------------------------------------------------------------------------- #
def reference_forward_f32(x, params, relu_flags):
    """Plain f32 forward (matches PyTorch eval-mode semantics)."""
    h = x
    for (w, b), relu in zip(params, relu_flags):
        h = h @ w + b
        if relu:
            h = jnp.maximum(h, 0.0)
    return h


def reference_forward_matched(x, params, relu_flags, compute_dtype):
    """Mirrors kernel math exactly (bf16 operands, f32 accumulation)."""
    h = x.astype(compute_dtype)
    for (w, b), relu in zip(params, relu_flags):
        h = jnp.dot(h.astype(compute_dtype), w.astype(compute_dtype),
                    preferred_element_type=jnp.float32) + b
        if relu:
            h = jnp.maximum(h, 0.0)
    return h


def init_linear_params(key, dims):
    """Deterministic init of a Linear stack with layer sizes `dims`."""
    params = []
    for i in range(len(dims) - 1):
        key, kw, kb = jax.random.split(key, 3)
        bound = 1.0 / jnp.sqrt(dims[i])
        w = jax.random.uniform(kw, (dims[i], dims[i + 1]), jnp.float32,
                               minval=-bound, maxval=bound)
        b = jax.random.uniform(kb, (1, dims[i + 1]), jnp.float32,
                               minval=-bound, maxval=bound)
        params.append((w, b))
    return key, params


# --------------------------------------------------------------------------- #
# Demo / self-check                                                           #
# --------------------------------------------------------------------------- #
if __name__ == "__main__":
    # EncoderNet(encoder_layer=[64, 48, 32], decoder_layer=[32, 48, 64])
    encoder_layer = [64, 48, 32]
    decoder_layer = [32, 48, 64]

    key = jax.random.PRNGKey(0)
    key, enc_params = init_linear_params(key, encoder_layer)
    key, dec_params = init_linear_params(key, decoder_layer)

    # Per the PyTorch module: Linear+ReLU(+Dropout) for all but the last layer
    # of each stack; the final layer of each stack is plain Linear.
    enc_relu = [True] * (len(encoder_layer) - 2) + [False]
    dec_relu = [True] * (len(decoder_layer) - 2) + [False]

    all_params = enc_params + dec_params
    all_relu = enc_relu + dec_relu

    B = 16
    key, kx = jax.random.split(key)
    x = jax.random.normal(kx, (B, encoder_layer[0]), jnp.float32)

    out = encoder_net_forward(x, all_params, all_relu)
    out = jax.block_until_ready(out)
    assert out.shape == (B, decoder_layer[-1])

    # Tight check vs. a reference that does the exact same (fused, bf16) math.
    f_params, f_relu = prepare_params(all_params, all_relu)
    ref_matched = reference_forward_matched(x, f_params, f_relu, jnp.bfloat16)
    ref_matched = ref_matched[:, :decoder_layer[-1]]
    assert jnp.allclose(out, ref_matched, atol=1e-3, rtol=1e-3), \
        "mismatch vs matched (bf16) reference"

    # Loose check vs. the unfused pure-f32 reference (PyTorch eval semantics).
    ref_f32 = reference_forward_f32(x, all_params, all_relu)
    assert jnp.allclose(out, ref_f32, atol=5e-2, rtol=5e-2), \
        "mismatch vs f32 reference"

    # Exercise the multi-row-padding / larger-tile path as well.
    key, kx2 = jax.random.split(key)
    x2 = jax.random.normal(kx2, (1000, encoder_layer[0]), jnp.float32)
    out2 = jax.block_until_ready(encoder_net_forward(x2, all_params, all_relu))
    ref2 = reference_forward_f32(x2, all_params, all_relu)
    assert out2.shape == ref2.shape
    assert jnp.allclose(out2, ref2, atol=5e-2, rtol=5e-2), \
        "mismatch vs f32 reference (B=1000)"

    print("KERNEL_OK")
</pallas_src>

<mosaic_0001>
module attributes {stable_mosaic.version = 11 : i64} {
  func.func @kernel(%arg0: i32, %arg1: memref<16x64xbf16, #tpu.memory_space<vmem>>, %arg2: memref<64x48xbf16, #tpu.memory_space<vmem>>, %arg3: memref<1x48xf32, #tpu.memory_space<vmem>>, %arg4: memref<48x48xbf16, #tpu.memory_space<vmem>>, %arg5: memref<1x48xf32, #tpu.memory_space<vmem>>, %arg6: memref<48x128xbf16, #tpu.memory_space<vmem>>, %arg7: memref<1x128xf32, #tpu.memory_space<vmem>>, %arg8: memref<16x128xf32, #tpu.memory_space<vmem>>) attributes {dimension_semantics = [#tpu.dimension_semantics<parallel>], iteration_bounds = array<i64: 1>, scalar_prefetch = 0 : i64, scratch_operands = 0 : i64, tpu.core_type = #tpu.core_type<tc>, window_params = [{transform_indices = @transform_0, window_bounds = array<i64: 16, 64>}, {pipeline_mode = #tpu.pipeline_mode<synchronous>, transform_indices = @transform_1, window_bounds = array<i64: 64, 48>}, {pipeline_mode = #tpu.pipeline_mode<synchronous>, transform_indices = @transform_2, window_bounds = array<i64: 1, 48>}, {pipeline_mode = #tpu.pipeline_mode<synchronous>, transform_indices = @transform_3, window_bounds = array<i64: 48, 48>}, {pipeline_mode = #tpu.pipeline_mode<synchronous>, transform_indices = @transform_4, window_bounds = array<i64: 1, 48>}, {pipeline_mode = #tpu.pipeline_mode<synchronous>, transform_indices = @transform_5, window_bounds = array<i64: 48, 128>}, {pipeline_mode = #tpu.pipeline_mode<synchronous>, transform_indices = @transform_6, window_bounds = array<i64: 1, 128>}, {transform_indices = @transform_7, window_bounds = array<i64: 16, 128>}]} {
    %c0 = arith.constant 0 : index
    %c0_0 = arith.constant 0 : index
    %0 = vector.load %arg1[%c0, %c0_0] : memref<16x64xbf16, #tpu.memory_space<vmem>>, vector<16x64xbf16>
    %c0_1 = arith.constant 0 : index
    %c0_2 = arith.constant 0 : index
    %1 = vector.load %arg2[%c0_1, %c0_2] : memref<64x48xbf16, #tpu.memory_space<vmem>>, vector<64x48xbf16>
    %c0_3 = arith.constant 0 : index
    %c0_4 = arith.constant 0 : index
    %2 = vector.load %arg3[%c0_3, %c0_4] : memref<1x48xf32, #tpu.memory_space<vmem>>, vector<1x48xf32>
    %cst = arith.constant dense<0.000000e+00> : vector<16x48xf32>
    %3 = tpu.matmul %0, %1, %cst {dimension_numbers = #tpu.dot_dimension_numbers<[1], [0], [0], [1], [0, 0, 1, 1], [], []>} : vector<16x64xbf16>, vector<64x48xbf16>, vector<16x48xf32> -> vector<16x48xf32>
    %4 = vector.broadcast %2 : vector<1x48xf32> to vector<16x48xf32>
    %5 = arith.addf %3, %4 : vector<16x48xf32>
    %cst_5 = arith.constant 0.000000e+00 : f32
    %6 = vector.broadcast %cst_5 : f32 to vector<16x48xf32>
    %7 = arith.maximumf %5, %6 : vector<16x48xf32>
    %c0_6 = arith.constant 0 : index
    %c0_7 = arith.constant 0 : index
    %8 = vector.load %arg4[%c0_6, %c0_7] : memref<48x48xbf16, #tpu.memory_space<vmem>>, vector<48x48xbf16>
    %c0_8 = arith.constant 0 : index
    %c0_9 = arith.constant 0 : index
    %9 = vector.load %arg5[%c0_8, %c0_9] : memref<1x48xf32, #tpu.memory_space<vmem>>, vector<1x48xf32>
    %10 = arith.truncf %7 : vector<16x48xf32> to vector<16x48xbf16>
    %cst_10 = arith.constant dense<0.000000e+00> : vector<16x48xf32>
    %11 = tpu.matmul %10, %8, %cst_10 {dimension_numbers = #tpu.dot_dimension_numbers<[1], [0], [0], [1], [0, 0, 1, 1], [], []>} : vector<16x48xbf16>, vector<48x48xbf16>, vector<16x48xf32> -> vector<16x48xf32>
    %12 = vector.broadcast %9 : vector<1x48xf32> to vector<16x48xf32>
    %13 = arith.addf %11, %12 : vector<16x48xf32>
    %cst_11 = arith.constant 0.000000e+00 : f32
    %14 = vector.broadcast %cst_11 : f32 to vector<16x48xf32>
    %15 = arith.maximumf %13, %14 : vector<16x48xf32>
    %c0_12 = arith.constant 0 : index
    %c0_13 = arith.constant 0 : index
    %16 = vector.load %arg6[%c0_12, %c0_13] : memref<48x128xbf16, #tpu.memory_space<vmem>>, vector<48x128xbf16>
    %c0_14 = arith.constant 0 : index
    %c0_15 = arith.constant 0 : index
    %17 = vector.load %arg7[%c0_14, %c0_15] : memref<1x128xf32, #tpu.memory_space<vmem>>, vector<1x128xf32>
    %18 = arith.truncf %15 : vector<16x48xf32> to vector<16x48xbf16>
    %cst_16 = arith.constant dense<0.000000e+00> : vector<16x128xf32>
    %19 = tpu.matmul %18, %16, %cst_16 {dimension_numbers = #tpu.dot_dimension_numbers<[1], [0], [0], [1], [0, 0, 1, 1], [], []>} : vector<16x48xbf16>, vector<48x128xbf16>, vector<16x128xf32> -> vector<16x128xf32>
    %20 = vector.broadcast %17 : vector<1x128xf32> to vector<16x128xf32>
    %21 = arith.addf %19, %20 : vector<16x128xf32>
    %c0_17 = arith.constant 0 : index
    %c0_18 = arith.constant 0 : index
    %22 = vector.load %arg8[%c0_17, %c0_18] : memref<16x128xf32, #tpu.memory_space<vmem>>, vector<16x128xf32>
    tpu.vector_store %arg8[%c0_17, %c0_18], %21 {strides = array<i32>} : memref<16x128xf32, #tpu.memory_space<vmem>>, vector<16x128xf32>,
    return
  }
  func.func @transform_0(%arg0: i32) -> (i32, i32) {
    %c0_i32 = arith.constant 0 : i32
    %c0_i32_0 = arith.constant 0 : i32
    return %arg0, %c0_i32 : i32, i32
  }
  func.func @transform_1(%arg0: i32) -> (i32, i32) {
    %c0_i32 = arith.constant 0 : i32
    %c0_i32_0 = arith.constant 0 : i32
    %c0_i32_1 = arith.constant 0 : i32
    return %c0_i32, %c0_i32_0 : i32, i32
  }
  func.func @transform_2(%arg0: i32) -> (i32, i32) {
    %c0_i32 = arith.constant 0 : i32
    %c0_i32_0 = arith.constant 0 : i32
    %c0_i32_1 = arith.constant 0 : i32
    return %c0_i32, %c0_i32_0 : i32, i32
  }
  func.func @transform_3(%arg0: i32) -> (i32, i32) {
    %c0_i32 = arith.constant 0 : i32
    %c0_i32_0 = arith.constant 0 : i32
    %c0_i32_1 = arith.constant 0 : i32
    return %c0_i32, %c0_i32_0 : i32, i32
  }
  func.func @transform_4(%arg0: i32) -> (i32, i32) {
    %c0_i32 = arith.constant 0 : i32
    %c0_i32_0 = arith.constant 0 : i32
    %c0_i32_1 = arith.constant 0 : i32
    return %c0_i32, %c0_i32_0 : i32, i32
  }
  func.func @transform_5(%arg0: i32) -> (i32, i32) {
    %c0_i32 = arith.constant 0 : i32
    %c0_i32_0 = arith.constant 0 : i32
    %c0_i32_1 = arith.constant 0 : i32
    return %c0_i32, %c0_i32_0 : i32, i32
  }
  func.func @transform_6(%arg0: i32) -> (i32, i32) {
    %c0_i32 = arith.constant 0 : i32
    %c0_i32_0 = arith.constant 0 : i32
    %c0_i32_1 = arith.constant 0 : i32
    return %c0_i32, %c0_i32_0 : i32, i32
  }
  func.func @transform_7(%arg0: i32) -> (i32, i32) {
    %c0_i32 = arith.constant 0 : i32
    %c0_i32_0 = arith.constant 0 : i32
    return %arg0, %c0_i32 : i32, i32
  }
}

</mosaic_0001>

<llo_original>
// kernel: tpu_custom_call.1
$region0: #{tpu_custom_call.1}
  #allocation0 [shape = 'u32[]', space=smem, size = 0x4, offset = 0x4, fixed_abs, tag = 'smem constant byte address 0x4 - core index']
  #allocation1 [shape = 'u32[144,128]{1,0:T(1,128)}', space=vmem, size = 0x12000, scoped, tag = 'internal scratch']
  %s0 = inlined_call_operand.vmem [shape: bf16[16,64], index: 0, kind: input, shape index: {}]
  %s1 = inlined_call_operand.vmem [shape: bf16[64,48], index: 1, kind: input, shape index: {}]
  %s2 = inlined_call_operand.vmem [shape: f32[1,48], index: 2, kind: input, shape index: {}]
  %s3 = inlined_call_operand.vmem [shape: bf16[48,48], index: 3, kind: input, shape index: {}]
  %s4 = inlined_call_operand.vmem [shape: f32[1,48], index: 4, kind: input, shape index: {}]
  %s5 = inlined_call_operand.vmem [shape: bf16[48,128], index: 5, kind: input, shape index: {}]
  %s6 = inlined_call_operand.vmem [shape: f32[1,128], index: 6, kind: input, shape index: {}]
  %s7 = inlined_call_operand.hbm [shape: f32[16,128], index: 7, kind: output, shape index: {}]
  %s8 = sld [smem:[#allocation0]]
  $region38: #{tpu_custom_call.1} parent=0
    _
  %s10 = ssub.s32 1, %s8
  %s11 = scalar_select 0, %s10, %s8
  $region1: #{tpu_custom_call.1} parent=0
    #allocation2 [shape = 'u8[8192]{0}', space=vmem, size = 0x2000, scoped, tag = 'output window, operand 0, single buffered']
    #allocation3 [shape = 's32[1]{0}', space=sflag, size = 0x4, scoped, tag = 'scoped memory for tpu_custom_call.1']
    %12 = vsyncpa [#allocation3], 0
    // Predicated region
    $region2: #{tpu_custom_call.1} parent=1 // pred_check
      _
    $region3: #{tpu_custom_call.1} parent=1 // pred_check_branch
      %14 = sbr.rel (0) target = $region5
    $region4: #{tpu_custom_call.1} parent=1 // pred_region
      _
    $region5: #{tpu_custom_call.1} parent=1 // pred_fallthru
      _
    // Predicated region
    $region6: #{tpu_custom_call.1} parent=1 // pred_check
      _
    $region7: #{tpu_custom_call.1} parent=1 // pred_check_branch
      %16 = sbr.rel (0) target = $region9
    $region8: #{tpu_custom_call.1} parent=1 // pred_region
      _
    $region9: #{tpu_custom_call.1} parent=1 // pred_fallthru
      _
    // Predicated region
    $region10: #{tpu_custom_call.1} parent=1 // pred_check
      _
    $region11: #{tpu_custom_call.1} parent=1 // pred_check_branch
      %18 = sbr.rel (0) target = $region13
    $region12: #{tpu_custom_call.1} parent=1 // pred_region
      _
    $region13: #{tpu_custom_call.1} parent=1 // pred_fallthru
      _
    // Predicated region
    $region14: #{tpu_custom_call.1} parent=1 // pred_check
      _
    $region15: #{tpu_custom_call.1} parent=1 // pred_check_branch
      %20 = sbr.rel (0) target = $region17
    $region16: #{tpu_custom_call.1} parent=1 // pred_region
      _
    $region17: #{tpu_custom_call.1} parent=1 // pred_fallthru
      _
    // Predicated region
    $region18: #{tpu_custom_call.1} parent=1 // pred_check
      _
    $region19: #{tpu_custom_call.1} parent=1 // pred_check_branch
      %22 = sbr.rel (0) target = $region21
    $region20: #{tpu_custom_call.1} parent=1 // pred_region
      _
    $region21: #{tpu_custom_call.1} parent=1 // pred_fallthru
      _
    // Predicated region
    $region22: #{tpu_custom_call.1} parent=1 // pred_check
      _
    $region23: #{tpu_custom_call.1} parent=1 // pred_check_branch
      %24 = sbr.rel (0) target = $region25
    $region24: #{tpu_custom_call.1} parent=1 // pred_region
      _
    $region25: #{tpu_custom_call.1} parent=1 // pred_fallthru
      _
    // Predicated region
    $region26: #{tpu_custom_call.1} parent=1 // pred_check
      _
    $region27: #{tpu_custom_call.1} parent=1 // pred_check_branch
      %26 = sbr.rel (0) target = $region29
    $region28: #{tpu_custom_call.1} parent=1 // pred_region
      _
    $region29: #{tpu_custom_call.1} parent=1 // pred_fallthru
      _
    %v28 = vld [vmem:[%s0] sm:$0xf]
    %v29 = vld [vmem:[%s0 + $0x4] sm:$0xf]
    %v30 = vld [vmem:[%s1] sm:$0xf]
    %v31 = vld [vmem:[%s1 + $0x4] sm:$0xf]
    %v32 = vld [vmem:[%s1 + $0x8] sm:$0xf]
    %v33 = vld [vmem:[%s1 + $0xc] sm:$0xf]
    %v34 = vld [vmem:[%s1 + $0x10] sm:$0xf]
    %v35 = vld [vmem:[%s1 + $0x14] sm:$0xf]
    %v36 = vld [vmem:[%s1 + $0x18] sm:$0xf]
    %v37 = vld [vmem:[%s1 + $0x1c] sm:$0xf]
    %v38 = vld [vmem:[%s2] sm:$0x1]
    %v40 = vlaneseq
    %v41 = vshrl.u32 %v40, 7
    %v42 = vsub.s32 0, %v41
    %v43 = vrot.slane %v38, %v42
    %v47 = vunpack.c.l.b16 %v28
    %v48 = vunpack.c.l.b16 %v29
    %v49 = vpack.c.b16 %v48, %v47
    %v58 = vunpack.c.l.b16 %v30
    %v59 = vunpack.c.l.b16 %v31
    %v60 = vunpack.c.l.b16 %v32
    %v61 = vunpack.c.l.b16 %v33
    %v62 = vunpack.c.l.b16 %v34
    %v63 = vunpack.c.l.b16 %v35
    %v64 = vunpack.c.l.b16 %v36
    %v65 = vunpack.c.l.b16 %v37
    %v66 = vpack.c.b16 %v59, %v58
    %v67 = vpack.c.b16 %v61, %v60
    %v68 = vpack.c.b16 %v63, %v62
    %v69 = vpack.c.b16 %v65, %v64
    %vm74 = vcmask 523264
    %v76 = vsel %vm74, %v49, 0
    %78 = vmatprep.subr.bf16.mxu0 0
    %79 = vmatpush1.bf16.msra.mxu0 %v66
    %80 = vmatprep.subr.bf16.mxu0 0
    %81 = vmatpush1.bf16.msra.mxu0 %v67
    %82 = vmatprep.subr.bf16.mxu0 0
    %83 = vmatpush1.bf16.msra.mxu0 %v68
    %84 = vmatprep.subr.bf16.mxu0 0
    %85 = vmatpush1.bf16.msra.mxu0 %v69
    %86 = vmatprep.subr.bf16.mxu0 0
    %87 = vmatpush1.bf16.msra.mxu0 0
    %88 = vmatprep.subr.bf16.mxu0 0
    %89 = vmatpush1.bf16.msra.mxu0 0
    %90 = vmatprep.subr.bf16.mxu0 0
    %91 = vmatpush1.bf16.msra.mxu0 0
    %92 = vmatprep.subr.bf16.mxu0 0
    %93 = vmatpush1.bf16.msra.mxu0 0
    %94 = vmatprep.subr.bf16.mxu0 0
    %95 = vmatpush1.bf16.msra.mxu0 0
    %96 = vmatprep.subr.bf16.mxu0 0
    %97 = vmatpush1.bf16.msra.mxu0 0
    %98 = vmatprep.subr.bf16.mxu0 0
    %99 = vmatpush1.bf16.msra.mxu0 0
    %100 = vmatprep.subr.bf16.mxu0 0
    %101 = vmatpush1.bf16.msra.mxu0 0
    %102 = vmatprep.subr.bf16.mxu0 0
    %103 = vmatpush1.bf16.msra.mxu0 0
    %104 = vmatprep.subr.bf16.mxu0 0
    %105 = vmatpush1.bf16.msra.mxu0 0
    %106 = vmatprep.subr.bf16.mxu0 0
    %107 = vmatpush1.bf16.msra.mxu0 0
    %108 = vmatprep.subr.bf16.mxu0 0
    %109 = vmatpush1.bf16.msra.mxu0 0
    %110 = vmatprep.mubr.bf16.mxu0 0
    %111 = vmatmul.mubr.bf16.gmra.mrb[0].mxu0 %v76
    %v112 = vpop.f32.mrb[0].mxu0
    %v113 = vadd.f32 %v43, %v112
    %v114 = vpop.f32.mrb[0].mxu0
    %v115 = vpop.f32.mrb[0].mxu0
    %v116 = vadd.f32 %v43, %v115
    %v117 = vpop.f32.mrb[0].mxu0
    %118 = vdwg.mxu0
    %v119 = vmax.f32 %v113, 0.0
    %v120 = vmax.f32 %v116, 0.0
    %v121 = vld [vmem:[%s3] sm:$0xf]
    %v122 = vld [vmem:[%s3 + $0x4] sm:$0xf]
    %v123 = vld [vmem:[%s3 + $0x8] sm:$0xf]
    %v124 = vld [vmem:[%s3 + $0xc] sm:$0xf]
    %v125 = vld [vmem:[%s3 + $0x10] sm:$0xf]
    %v126 = vld [vmem:[%s3 + $0x14] sm:$0xf]
    %v127 = vld [vmem:[%s4] sm:$0x1]
    %v128 = vpack.c.bf16 %v120, %v119
    %v130 = vlaneseq
    %v131 = vshrl.u32 %v130, 7
    %v132 = vsub.s32 0, %v131
    %v133 = vrot.slane %v127, %v132
    %v141 = vunpack.c.l.b16 %v121
    %v142 = vunpack.c.l.b16 %v122
    %v143 = vunpack.c.l.b16 %v123
    %v144 = vunpack.c.l.b16 %v124
    %v145 = vunpack.c.l.b16 %v125
    %v146 = vunpack.c.l.b16 %v126
    %v147 = vpack.c.b16 %v142, %v141
    %v148 = vpack.c.b16 %v144, %v143
    %v149 = vpack.c.b16 %v146, %v145
    %vm153 = vcmask 392192
    %v155 = vsel %vm153, %v128, 0
    %157 = vmatprep.subr.bf16.mxu0 0
    %158 = vmatpush1.bf16.msra.mxu0 %v147
    %159 = vmatprep.subr.bf16.mxu0 0
    %160 = vmatpush1.bf16.msra.mxu0 %v148
    %161 = vmatprep.subr.bf16.mxu0 0
    %162 = vmatpush1.bf16.msra.mxu0 %v149
    %163 = vmatprep.subr.bf16.mxu0 0
    %164 = vmatpush1.bf16.msra.mxu0 0
    %165 = vmatprep.subr.bf16.mxu0 0
    %166 = vmatpush1.bf16.msra.mxu0 0
    %167 = vmatprep.subr.bf16.mxu0 0
    %168 = vmatpush1.bf16.msra.mxu0 0
    %169 = vmatprep.subr.bf16.mxu0 0
    %170 = vmatpush1.bf16.msra.mxu0 0
    %171 = vmatprep.subr.bf16.mxu0 0
    %172 = vmatpush1.bf16.msra.mxu0 0
    %173 = vmatprep.subr.bf16.mxu0 0
    %174 = vmatpush1.bf16.msra.mxu0 0
    %175 = vmatprep.subr.bf16.mxu0 0
    %176 = vmatpush1.bf16.msra.mxu0 0
    %177 = vmatprep.subr.bf16.mxu0 0
    %178 = vmatpush1.bf16.msra.mxu0 0
    %179 = vmatprep.subr.bf16.mxu0 0
    %180 = vmatpush1.bf16.msra.mxu0 0
    %181 = vmatprep.subr.bf16.mxu0 0
    %182 = vmatpush1.bf16.msra.mxu0 0
    %183 = vmatprep.subr.bf16.mxu0 0
    %184 = vmatpush1.bf16.msra.mxu0 0
    %185 = vmatprep.subr.bf16.mxu0 0
    %186 = vmatpush1.bf16.msra.mxu0 0
    %187 = vmatprep.subr.bf16.mxu0 0
    %188 = vmatpush1.bf16.msra.mxu0 0
    %189 = vmatprep.mubr.bf16.mxu0 0
    %190 = vmatmul.mubr.bf16.gmra.mrb[0].mxu0 %v155
    %v191 = vpop.f32.mrb[0].mxu0
    %v192 = vadd.f32 %v133, %v191
    %v193 = vpop.f32.mrb[0].mxu0
    %v194 = vpop.f32.mrb[0].mxu0
    %v195 = vadd.f32 %v133, %v194
    %v196 = vpop.f32.mrb[0].mxu0
    %197 = vdwg.mxu0
    %v198 = vmax.f32 %v192, 0.0
    %v199 = vmax.f32 %v195, 0.0
    %v200 = vld [vmem:[%s5] sm:$0xf]
    %v201 = vld [vmem:[%s5 + $0x4] sm:$0xf]
    %v202 = vld [vmem:[%s5 + $0x8] sm:$0xf]
    %v203 = vld [vmem:[%s5 + $0xc] sm:$0xf]
    %v204 = vld [vmem:[%s5 + $0x10] sm:$0xf]
    %v205 = vld [vmem:[%s5 + $0x14] sm:$0xf]
    %v206 = vld [vmem:[%s6] sm:$0x1]
    %v207 = vpack.c.bf16 %v199, %v198
    %v209 = vlaneseq
    %v210 = vshrl.u32 %v209, 7
    %v211 = vsub.s32 0, %v210
    %v212 = vrot.slane %v206, %v211
    %v220 = vunpack.c.l.b16 %v200
    %v221 = vunpack.c.l.b16 %v201
    %v222 = vunpack.c.l.b16 %v202
    %v223 = vunpack.c.l.b16 %v203
    %v224 = vunpack.c.l.b16 %v204
    %v225 = vunpack.c.l.b16 %v205
    %v226 = vpack.c.b16 %v221, %v220
    %v227 = vpack.c.b16 %v223, %v222
    %v228 = vpack.c.b16 %v225, %v224
    %v233 = vsel %vm153, %v207, 0
    %235 = vmatprep.subr.bf16.mxu0 0
    %236 = vmatpush1.bf16.msra.mxu0 %v226
    %237 = vmatprep.subr.bf16.mxu0 0
    %238 = vmatpush1.bf16.msra.mxu0 %v227
    %239 = vmatprep.subr.bf16.mxu0 0
    %240 = vmatpush1.bf16.msra.mxu0 %v228
    %241 = vmatprep.subr.bf16.mxu0 0
    %242 = vmatpush1.bf16.msra.mxu0 0
    %243 = vmatprep.subr.bf16.mxu0 0
    %244 = vmatpush1.bf16.msra.mxu0 0
    %245 = vmatprep.subr.bf16.mxu0 0
    %246 = vmatpush1.bf16.msra.mxu0 0
    %247 = vmatprep.subr.bf16.mxu0 0
    %248 = vmatpush1.bf16.msra.mxu0 0
    %249 = vmatprep.subr.bf16.mxu0 0
    %250 = vmatpush1.bf16.msra.mxu0 0
    %251 = vmatprep.subr.bf16.mxu0 0
    %252 = vmatpush1.bf16.msra.mxu0 0
    %253 = vmatprep.subr.bf16.mxu0 0
    %254 = vmatpush1.bf16.msra.mxu0 0
    %255 = vmatprep.subr.bf16.mxu0 0
    %256 = vmatpush1.bf16.msra.mxu0 0
    %257 = vmatprep.subr.bf16.mxu0 0
    %258 = vmatpush1.bf16.msra.mxu0 0
    %259 = vmatprep.subr.bf16.mxu0 0
    %260 = vmatpush1.bf16.msra.mxu0 0
    %261 = vmatprep.subr.bf16.mxu0 0
    %262 = vmatpush1.bf16.msra.mxu0 0
    %263 = vmatprep.subr.bf16.mxu0 0
    %264 = vmatpush1.bf16.msra.mxu0 0
    %265 = vmatprep.subr.bf16.mxu0 0
    %266 = vmatpush1.bf16.msra.mxu0 0
    %267 = vmatprep.mubr.bf16.mxu0 0
    %268 = vmatmul.mubr.bf16.gmra.mrb[0].mxu0 %v233
    %v269 = vpop.f32.mrb[0].mxu0
    %v270 = vadd.f32 %v212, %v269
    %v271 = vpop.f32.mrb[0].mxu0
    %v272 = vpop.f32.mrb[0].mxu0
    %v273 = vadd.f32 %v212, %v272
    %v274 = vpop.f32.mrb[0].mxu0
    %275 = vdwg.mxu0
    %276 = vst [vmem:[#allocation2] sm:$0xff] %v270
    %277 = vst [vmem:[#allocation2 + $0x8] sm:$0xff] %v273
    // Predicated region
    $region30: #{tpu_custom_call.1} parent=1 // pred_check
      _
    $region31: #{tpu_custom_call.1} parent=1 // pred_check_branch
      %279 = sbr.rel (0) target = $region33
    $region32: #{tpu_custom_call.1} parent=1 // pred_region
      %s281 = ssub.s32 256, 256
      %282 = vsyncadd [#allocation3], %s281
      %s283 = sshll.u32 [#allocation2], 4
      %s284 = int_to_ptr.vmem [resolvable:$true] %s283
      %289 = dma.vmem_to_hbm [thread:$0]  %s284, 256, %s7, [#allocation3], 128, 128, 8
    $region33: #{tpu_custom_call.1} parent=1 // pred_fallthru
      _
    // Predicated region
    $region34: #{tpu_custom_call.1} parent=1 // pred_check
      _
    $region35: #{tpu_custom_call.1} parent=1 // pred_check_branch
      %291 = sbr.rel (0) target = $region37
    $region36: #{tpu_custom_call.1} parent=1 // pred_region
      %292 = dma.done [#allocation3], 256
    $region37: #{tpu_custom_call.1} parent=1 // pred_fallthru
      _
    %293 = vsyncpa [#allocation3], 1

</llo_original>
